<compile_context>
chip_gen: v5e
topology: v5e:2x2
jax: 0.10.0
libtpu: 0.0.40
codegen_flags: <defaults>
</compile_context>

<pallas_src>
import jax
import jax.numpy as jnp
from jax.experimental import pallas as pl
from jax.experimental.pallas import tpu as pltpu


def _round_up(x, m):
    return (x + m - 1) // m * m


def mrn_kernel(q_ref, i_ref,
               wqr_ref, bqr_ref,     # fused [Wqs | Wres], [bqs | bres]
               w1_ref, b1_ref,
               w2_ref, b2_ref,
               out_ref):
    Hp = out_ref.shape[1]
    q = q_ref[...]                    # (TB, Qp)  compute dtype (bf16)
    x = i_ref[...]                    # (TB, Ip)  compute dtype (bf16)

    # Fused q projections: one (TB, Qp) @ (Qp, 2*Hp) MXU matmul, f32 accumulation.
    qr = jnp.dot(q, wqr_ref[...], preferred_element_type=jnp.float32) + bqr_ref[...]
    question = jnp.tanh(qr[:, :Hp])   # (TB, Hp) f32   (tanh on EUP, f32 epilogue)
    res = qr[:, Hp:]                  # (TB, Hp) f32   residual branch (no activation)

    # vb branch: Linear -> Tanh -> Linear -> Tanh
    h1 = jnp.tanh(
        jnp.dot(x, w1_ref[...], preferred_element_type=jnp.float32) + b1_ref[...]
    )
    objects = jnp.tanh(
        jnp.dot(h1.astype(w2_ref.dtype), w2_ref[...],
                preferred_element_type=jnp.float32) + b2_ref[...]
    )

    # Fused epilogue (VPU slot has slack next to the MXU/EUP work).
    out_ref[...] = (objects * question + res).astype(out_ref.dtype)


def mrn_block(q, i, params, *, compute_dtype=jnp.bfloat16):
    """q: (B, Q), i: (B, I). Weights stored (in, out), biases (1, H)."""
    wqs, bqs, w1, b1, w2, b2, wres, bres = params
    B, Q = q.shape
    I = i.shape[1]
    H = wqs.shape[1]

    # Lane-dense padded sizes.
    Qp = _round_up(Q, 128)
    Ip = _round_up(I, 128)
    Hp = _round_up(H, 128)

    # --- generation-aware tile sizing (64 MiB VMEM on v7x, 128 MiB v5e/v6e) ---
    try:
        vmem_cap = int(pltpu.get_tpu_info().vmem_capacity_bytes)
    except Exception:
        vmem_cap = 64 << 20                      # conservative fallback (v7x)
    budget = vmem_cap // 2

    w_elt = jnp.dtype(compute_dtype).itemsize
    weight_bytes = w_elt * (Qp * 2 * Hp + Ip * Hp + Hp * Hp) + 4 * (4 * Hp)
    tb = 1024
    while tb > 16:
        # double-buffered activation tiles: q, i (compute dtype) + out (f32)
        act_bytes = 2 * (tb * Qp * w_elt + tb * Ip * w_elt + tb * Hp * 4)
        if weight_bytes + act_bytes <= budget:
            break
        tb //= 2
    TB = min(tb, max(16, _round_up(B, 16)))      # don't over-tile tiny batches
    Bp = _round_up(B, TB)

    def pad2(a, r, c, dtype):
        return jnp.pad(a, ((0, r - a.shape[0]), (0, c - a.shape[1]))).astype(dtype)

    qp = pad2(q, Bp, Qp, compute_dtype)
    ip = pad2(i, Bp, Ip, compute_dtype)
    # Fuse the two q-projections: [Wqs | Wres] -> (Qp, 2*Hp).
    wqr = jnp.concatenate([pad2(wqs, Qp, Hp, compute_dtype),
                           pad2(wres, Qp, Hp, compute_dtype)], axis=1)
    bqr = jnp.concatenate([pad2(bqs, 1, Hp, jnp.float32),
                           pad2(bres, 1, Hp, jnp.float32)], axis=1)
    w1p = pad2(w1, Ip, Hp, compute_dtype)
    b1p = pad2(b1, 1, Hp, jnp.float32)
    w2p = pad2(w2, Hp, Hp, compute_dtype)
    b2p = pad2(b2, 1, Hp, jnp.float32)

    resident = lambda b: (0, 0)                  # weights: same block every step
    out = pl.pallas_call(
        mrn_kernel,
        out_shape=jax.ShapeDtypeStruct((Bp, Hp), jnp.float32),
        grid_spec=pltpu.PrefetchScalarGridSpec(
            num_scalar_prefetch=0,
            grid=(Bp // TB,),
            in_specs=[
                pl.BlockSpec((TB, Qp), lambda b: (b, 0)),       # q tile
                pl.BlockSpec((TB, Ip), lambda b: (b, 0)),       # i tile
                pl.BlockSpec((Qp, 2 * Hp), resident),           # [Wqs|Wres]
                pl.BlockSpec((1, 2 * Hp), resident),            # [bqs|bres]
                pl.BlockSpec((Ip, Hp), resident),               # W1
                pl.BlockSpec((1, Hp), resident),                # b1
                pl.BlockSpec((Hp, Hp), resident),               # W2
                pl.BlockSpec((1, Hp), resident),                # b2
            ],
            out_specs=pl.BlockSpec((TB, Hp), lambda b: (b, 0)),
        ),
        compiler_params=pltpu.CompilerParams(
            dimension_semantics=("parallel",),                  # megacore on v7x
            vmem_limit_bytes=int(vmem_cap * 0.75),
        ),
    )(qp, ip, wqr, bqr, w1p, b1p, w2p, b2p)

    return out[:B, :H]


def mrn_block_ref(q, i, params):
    wqs, bqs, w1, b1, w2, b2, wres, bres = params
    question = jnp.tanh(q @ wqs + bqs)
    objects = jnp.tanh(jnp.tanh(i @ w1 + b1) @ w2 + b2)
    return objects * question + (q @ wres + bres)


if __name__ == "__main__":
    B, Q, I, H = 8, 16, 32, 32

    key = jax.random.PRNGKey(0)
    keys = jax.random.split(key, 10)

    # Deterministic synthetic parameters (stored as (in, out) for x @ W).
    wqs  = jax.random.normal(keys[0], (Q, H), jnp.float32) * 0.1
    bqs  = jax.random.normal(keys[1], (1, H), jnp.float32) * 0.1
    w1   = jax.random.normal(keys[2], (I, H), jnp.float32) * 0.1
    b1   = jax.random.normal(keys[3], (1, H), jnp.float32) * 0.1
    w2   = jax.random.normal(keys[4], (H, H), jnp.float32) * 0.1
    b2   = jax.random.normal(keys[5], (1, H), jnp.float32) * 0.1
    wres = jax.random.normal(keys[6], (Q, H), jnp.float32) * 0.1
    bres = jax.random.normal(keys[7], (1, H), jnp.float32) * 0.1
    params = (wqs, bqs, w1, b1, w2, b2, wres, bres)

    q = jax.random.normal(keys[8], (B, Q), jnp.float32)
    i = jax.random.normal(keys[9], (B, I), jnp.float32)

    out = mrn_block(q, i, params)
    out = jax.block_until_ready(out)

    ref = mrn_block_ref(q, i, params)
    assert out.shape == (B, H)
    # bf16 MXU operands with f32 accumulation -> relaxed tolerance vs f32 ref.
    assert jnp.allclose(out, ref, atol=2e-2, rtol=2e-2), "mismatch vs reference"

    print("KERNEL_OK")
</pallas_src>

<mosaic_0001>
module attributes {stable_mosaic.version = 11 : i64} {
  func.func @mrn_kernel(%arg0: i32, %arg1: memref<16x128xbf16, #tpu.memory_space<vmem>>, %arg2: memref<16x128xbf16, #tpu.memory_space<vmem>>, %arg3: memref<128x256xbf16, #tpu.memory_space<vmem>>, %arg4: memref<1x256xf32, #tpu.memory_space<vmem>>, %arg5: memref<128x128xbf16, #tpu.memory_space<vmem>>, %arg6: memref<1x128xf32, #tpu.memory_space<vmem>>, %arg7: memref<128x128xbf16, #tpu.memory_space<vmem>>, %arg8: memref<1x128xf32, #tpu.memory_space<vmem>>, %arg9: memref<16x128xf32, #tpu.memory_space<vmem>>) attributes {dimension_semantics = [#tpu.dimension_semantics<parallel>], iteration_bounds = array<i64: 1>, scalar_prefetch = 0 : i64, scratch_operands = 0 : i64, tpu.core_type = #tpu.core_type<tc>, window_params = [{transform_indices = @transform_0, window_bounds = array<i64: 16, 128>}, {transform_indices = @transform_1, window_bounds = array<i64: 16, 128>}, {pipeline_mode = #tpu.pipeline_mode<synchronous>, transform_indices = @transform_2, window_bounds = array<i64: 128, 256>}, {pipeline_mode = #tpu.pipeline_mode<synchronous>, transform_indices = @transform_3, window_bounds = array<i64: 1, 256>}, {pipeline_mode = #tpu.pipeline_mode<synchronous>, transform_indices = @transform_4, window_bounds = array<i64: 128, 128>}, {pipeline_mode = #tpu.pipeline_mode<synchronous>, transform_indices = @transform_5, window_bounds = array<i64: 1, 128>}, {pipeline_mode = #tpu.pipeline_mode<synchronous>, transform_indices = @transform_6, window_bounds = array<i64: 128, 128>}, {pipeline_mode = #tpu.pipeline_mode<synchronous>, transform_indices = @transform_7, window_bounds = array<i64: 1, 128>}, {transform_indices = @transform_8, window_bounds = array<i64: 16, 128>}]} {
    %c0 = arith.constant 0 : index
    %c0_0 = arith.constant 0 : index
    %0 = vector.load %arg1[%c0, %c0_0] : memref<16x128xbf16, #tpu.memory_space<vmem>>, vector<16x128xbf16>
    %c0_1 = arith.constant 0 : index
    %c0_2 = arith.constant 0 : index
    %1 = vector.load %arg2[%c0_1, %c0_2] : memref<16x128xbf16, #tpu.memory_space<vmem>>, vector<16x128xbf16>
    %c0_3 = arith.constant 0 : index
    %c0_4 = arith.constant 0 : index
    %2 = vector.load %arg3[%c0_3, %c0_4] : memref<128x256xbf16, #tpu.memory_space<vmem>>, vector<128x256xbf16>
    %cst = arith.constant dense<0.000000e+00> : vector<16x256xf32>
    %3 = tpu.matmul %0, %2, %cst {dimension_numbers = #tpu.dot_dimension_numbers<[1], [0], [0], [1], [0, 0, 1, 1], [], []>} : vector<16x128xbf16>, vector<128x256xbf16>, vector<16x256xf32> -> vector<16x256xf32>
    %c0_5 = arith.constant 0 : index
    %c0_6 = arith.constant 0 : index
    %4 = vector.load %arg4[%c0_5, %c0_6] : memref<1x256xf32, #tpu.memory_space<vmem>>, vector<1x256xf32>
    %5 = vector.broadcast %4 : vector<1x256xf32> to vector<16x256xf32>
    %6 = arith.addf %3, %5 : vector<16x256xf32>
    %7 = vector.extract_strided_slice %6 {offsets = [0, 0], sizes = [16, 128], strides = [1, 1]} : vector<16x256xf32> to vector<16x128xf32>
    %8 = math.tanh %7 : vector<16x128xf32>
    %9 = vector.extract_strided_slice %6 {offsets = [0, 128], sizes = [16, 128], strides = [1, 1]} : vector<16x256xf32> to vector<16x128xf32>
    %c0_7 = arith.constant 0 : index
    %c0_8 = arith.constant 0 : index
    %10 = vector.load %arg5[%c0_7, %c0_8] : memref<128x128xbf16, #tpu.memory_space<vmem>>, vector<128x128xbf16>
    %cst_9 = arith.constant dense<0.000000e+00> : vector<16x128xf32>
    %11 = tpu.matmul %1, %10, %cst_9 {dimension_numbers = #tpu.dot_dimension_numbers<[1], [0], [0], [1], [0, 0, 1, 1], [], []>} : vector<16x128xbf16>, vector<128x128xbf16>, vector<16x128xf32> -> vector<16x128xf32>
    %c0_10 = arith.constant 0 : index
    %c0_11 = arith.constant 0 : index
    %12 = vector.load %arg6[%c0_10, %c0_11] : memref<1x128xf32, #tpu.memory_space<vmem>>, vector<1x128xf32>
    %13 = vector.broadcast %12 : vector<1x128xf32> to vector<16x128xf32>
    %14 = arith.addf %11, %13 : vector<16x128xf32>
    %15 = math.tanh %14 : vector<16x128xf32>
    %16 = arith.truncf %15 : vector<16x128xf32> to vector<16x128xbf16>
    %c0_12 = arith.constant 0 : index
    %c0_13 = arith.constant 0 : index
    %17 = vector.load %arg7[%c0_12, %c0_13] : memref<128x128xbf16, #tpu.memory_space<vmem>>, vector<128x128xbf16>
    %cst_14 = arith.constant dense<0.000000e+00> : vector<16x128xf32>
    %18 = tpu.matmul %16, %17, %cst_14 {dimension_numbers = #tpu.dot_dimension_numbers<[1], [0], [0], [1], [0, 0, 1, 1], [], []>} : vector<16x128xbf16>, vector<128x128xbf16>, vector<16x128xf32> -> vector<16x128xf32>
    %c0_15 = arith.constant 0 : index
    %c0_16 = arith.constant 0 : index
    %19 = vector.load %arg8[%c0_15, %c0_16] : memref<1x128xf32, #tpu.memory_space<vmem>>, vector<1x128xf32>
    %20 = vector.broadcast %19 : vector<1x128xf32> to vector<16x128xf32>
    %21 = arith.addf %18, %20 : vector<16x128xf32>
    %22 = math.tanh %21 : vector<16x128xf32>
    %23 = arith.mulf %22, %8 : vector<16x128xf32>
    %24 = arith.addf %23, %9 : vector<16x128xf32>
    %c0_17 = arith.constant 0 : index
    %c0_18 = arith.constant 0 : index
    %25 = vector.load %arg9[%c0_17, %c0_18] : memref<16x128xf32, #tpu.memory_space<vmem>>, vector<16x128xf32>
    tpu.vector_store %arg9[%c0_17, %c0_18], %24 {strides = array<i32>} : memref<16x128xf32, #tpu.memory_space<vmem>>, vector<16x128xf32>,
    return
  }
  func.func @transform_0(%arg0: i32) -> (i32, i32) {
    %c0_i32 = arith.constant 0 : i32
    %c0_i32_0 = arith.constant 0 : i32
    return %arg0, %c0_i32 : i32, i32
  }
  func.func @transform_1(%arg0: i32) -> (i32, i32) {
    %c0_i32 = arith.constant 0 : i32
    %c0_i32_0 = arith.constant 0 : i32
    return %arg0, %c0_i32 : i32, i32
  }
  func.func @transform_2(%arg0: i32) -> (i32, i32) {
    %c0_i32 = arith.constant 0 : i32
    %c0_i32_0 = arith.constant 0 : i32
    %c0_i32_1 = arith.constant 0 : i32
    return %c0_i32, %c0_i32_0 : i32, i32
  }
  func.func @transform_3(%arg0: i32) -> (i32, i32) {
    %c0_i32 = arith.constant 0 : i32
    %c0_i32_0 = arith.constant 0 : i32
    %c0_i32_1 = arith.constant 0 : i32
    return %c0_i32, %c0_i32_0 : i32, i32
  }
  func.func @transform_4(%arg0: i32) -> (i32, i32) {
    %c0_i32 = arith.constant 0 : i32
    %c0_i32_0 = arith.constant 0 : i32
    %c0_i32_1 = arith.constant 0 : i32
    return %c0_i32, %c0_i32_0 : i32, i32
  }
  func.func @transform_5(%arg0: i32) -> (i32, i32) {
    %c0_i32 = arith.constant 0 : i32
    %c0_i32_0 = arith.constant 0 : i32
    %c0_i32_1 = arith.constant 0 : i32
    return %c0_i32, %c0_i32_0 : i32, i32
  }
  func.func @transform_6(%arg0: i32) -> (i32, i32) {
    %c0_i32 = arith.constant 0 : i32
    %c0_i32_0 = arith.constant 0 : i32
    %c0_i32_1 = arith.constant 0 : i32
    return %c0_i32, %c0_i32_0 : i32, i32
  }
  func.func @transform_7(%arg0: i32) -> (i32, i32) {
    %c0_i32 = arith.constant 0 : i32
    %c0_i32_0 = arith.constant 0 : i32
    %c0_i32_1 = arith.constant 0 : i32
    return %c0_i32, %c0_i32_0 : i32, i32
  }
  func.func @transform_8(%arg0: i32) -> (i32, i32) {
    %c0_i32 = arith.constant 0 : i32
    %c0_i32_0 = arith.constant 0 : i32
    return %arg0, %c0_i32 : i32, i32
  }
}

</mosaic_0001>

<llo_original>
// kernel: tpu_custom_call.1
$region0: #{tpu_custom_call.1}
  #allocation0 [shape = 'u32[]', space=smem, size = 0x4, offset = 0x4, fixed_abs, tag = 'smem constant byte address 0x4 - core index']
  #allocation1 [shape = 'u32[72,128]{1,0:T(1,128)}', space=vmem, size = 0x9000, scoped, tag = 'internal scratch']
  %s0 = inlined_call_operand.hbm [shape: bf16[16,128], index: 0, kind: input, shape index: {}]
  %s1 = inlined_call_operand.hbm [shape: bf16[16,128], index: 1, kind: input, shape index: {}]
  %s2 = inlined_call_operand.hbm [shape: bf16[128,256], index: 2, kind: input, shape index: {}]
  %s3 = inlined_call_operand.vmem [shape: f32[1,256], index: 3, kind: input, shape index: {}]
  %s4 = inlined_call_operand.hbm [shape: bf16[128,128], index: 4, kind: input, shape index: {}]
  %s5 = inlined_call_operand.vmem [shape: f32[1,128], index: 5, kind: input, shape index: {}]
  %s6 = inlined_call_operand.hbm [shape: bf16[128,128], index: 6, kind: input, shape index: {}]
  %s7 = inlined_call_operand.vmem [shape: f32[1,128], index: 7, kind: input, shape index: {}]
  %s8 = inlined_call_operand.hbm [shape: f32[16,128], index: 8, kind: output, shape index: {}]
  %s9 = sld [smem:[#allocation0]]
  $region62: #{tpu_custom_call.1} parent=0
    _
  %s11 = ssub.s32 1, %s9
  %s12 = scalar_select 0, %s11, %s9
  $region1: #{tpu_custom_call.1} parent=0
    #allocation2 [shape = 'u8[4096]{0}', space=vmem, size = 0x1000, scoped, tag = 'input window, operand 0, single buffered']
    #allocation3 [shape = 's32[1]{0}', space=sflag, size = 0x4, scoped, tag = 'scoped memory for tpu_custom_call.1']
    #allocation4 [shape = 's32[1]{0}', space=sflag, size = 0x4, scoped, tag = 'scoped memory for tpu_custom_call.1']
    #allocation5 [shape = 'u8[4096]{0}', space=vmem, size = 0x1000, scoped, tag = 'input window, operand 1, single buffered']
    #allocation6 [shape = 's32[1]{0}', space=sflag, size = 0x4, scoped, tag = 'scoped memory for tpu_custom_call.1']
    #allocation7 [shape = 'u8[65536]{0}', space=vmem, size = 0x10000, scoped, tag = 'input window, operand 2, single buffered']
    #allocation8 [shape = 'u8[32768]{0}', space=vmem, size = 0x8000, scoped, tag = 'input window, operand 4, single buffered']
    #allocation9 [shape = 's32[1]{0}', space=sflag, size = 0x4, scoped, tag = 'scoped memory for tpu_custom_call.1']
    #allocation10 [shape = 'u8[32768]{0}', space=vmem, size = 0x8000, scoped, tag = 'input window, operand 6, single buffered']
    #allocation11 [shape = 'u8[8192]{0}', space=vmem, size = 0x2000, scoped, tag = 'output window, operand 0, single buffered']
    %13 = vsyncpa [#allocation3], 0
    %14 = vsyncpa [#allocation6], 0
    %15 = vsyncpa [#allocation9], 0
    %16 = vsyncpa [#allocation4], 0
    // Predicated region
    $region2: #{tpu_custom_call.1} parent=1 // pred_check
      _
    $region3: #{tpu_custom_call.1} parent=1 // pred_check_branch
      %18 = sbr.rel (0) target = $region5
    $region4: #{tpu_custom_call.1} parent=1 // pred_region
      %20 = vsyncadd [#allocation3], 0
      %s21 = sshll.u32 %s0, 4
      %s22 = int_to_ptr.hbm [resolvable:$true] %s21
      %s23 = sshll.u32 [#allocation2], 4
      %s24 = int_to_ptr.vmem [resolvable:$true] %s23
      %29 = dma.hbm_to_vmem [thread:$0]  %s22, 128, %s24, [#allocation3], 64, 64, 4
    $region5: #{tpu_custom_call.1} parent=1 // pred_fallthru
      _
    // Predicated region
    $region6: #{tpu_custom_call.1} parent=1 // pred_check
      _
    $region7: #{tpu_custom_call.1} parent=1 // pred_check_branch
      %31 = sbr.rel (0) target = $region9
    $region8: #{tpu_custom_call.1} parent=1 // pred_region
      %33 = vsyncadd [#allocation6], 0
      %s34 = sshll.u32 %s1, 4
      %s35 = int_to_ptr.hbm [resolvable:$true] %s34
      %s36 = sshll.u32 [#allocation5], 4
      %s37 = int_to_ptr.vmem [resolvable:$true] %s36
      %42 = dma.hbm_to_vmem [thread:$0]  %s35, 128, %s37, [#allocation6], 64, 64, 4
    $region9: #{tpu_custom_call.1} parent=1 // pred_fallthru
      _
    // Predicated region
    $region10: #{tpu_custom_call.1} parent=1 // pred_check
      _
    $region11: #{tpu_custom_call.1} parent=1 // pred_check_branch
      %44 = sbr.rel (0) target = $region13
    $region12: #{tpu_custom_call.1} parent=1 // pred_region
      %46 = vsyncadd [#allocation6], 0
      %s47 = sshll.u32 %s2, 4
      %s48 = int_to_ptr.hbm [resolvable:$true] %s47
      %s49 = sshll.u32 [#allocation7], 4
      %s50 = int_to_ptr.vmem [resolvable:$true] %s49
      %55 = dma.hbm_to_vmem [thread:$0]  %s48, 2048, %s50, [#allocation6], 128, 128, 8
    $region13: #{tpu_custom_call.1} parent=1 // pred_fallthru
      _
    // Predicated region
    $region14: #{tpu_custom_call.1} parent=1 // pred_check
      _
    $region15: #{tpu_custom_call.1} parent=1 // pred_check_branch
      %57 = sbr.rel (0) target = $region17
    $region16: #{tpu_custom_call.1} parent=1 // pred_region
      _
    $region17: #{tpu_custom_call.1} parent=1 // pred_fallthru
      _
    // Predicated region
    $region18: #{tpu_custom_call.1} parent=1 // pred_check
      _
    $region19: #{tpu_custom_call.1} parent=1 // pred_check_branch
      %59 = sbr.rel (0) target = $region21
    $region20: #{tpu_custom_call.1} parent=1 // pred_region
      %61 = vsyncadd [#allocation9], 0
      %s62 = sshll.u32 %s4, 4
      %s63 = int_to_ptr.hbm [resolvable:$true] %s62
      %s64 = sshll.u32 [#allocation8], 4
      %s65 = int_to_ptr.vmem [resolvable:$true] %s64
      %70 = dma.hbm_to_vmem [thread:$0]  %s63, 1024, %s65, [#allocation9], 64, 64, 4
    $region21: #{tpu_custom_call.1} parent=1 // pred_fallthru
      _
    // Predicated region
    $region22: #{tpu_custom_call.1} parent=1 // pred_check
      _
    $region23: #{tpu_custom_call.1} parent=1 // pred_check_branch
      %72 = sbr.rel (0) target = $region25
    $region24: #{tpu_custom_call.1} parent=1 // pred_region
      _
    $region25: #{tpu_custom_call.1} parent=1 // pred_fallthru
      _
    // Predicated region
    $region26: #{tpu_custom_call.1} parent=1 // pred_check
      _
    $region27: #{tpu_custom_call.1} parent=1 // pred_check_branch
      %74 = sbr.rel (0) target = $region29
    $region28: #{tpu_custom_call.1} parent=1 // pred_region
      %76 = vsyncadd [#allocation9], 0
      %s77 = sshll.u32 %s6, 4
      %s78 = int_to_ptr.hbm [resolvable:$true] %s77
      %s79 = sshll.u32 [#allocation10], 4
      %s80 = int_to_ptr.vmem [resolvable:$true] %s79
      %85 = dma.hbm_to_vmem [thread:$0]  %s78, 1024, %s80, [#allocation9], 64, 64, 4
    $region29: #{tpu_custom_call.1} parent=1 // pred_fallthru
      _
    // Predicated region
    $region30: #{tpu_custom_call.1} parent=1 // pred_check
      _
    $region31: #{tpu_custom_call.1} parent=1 // pred_check_branch
      %87 = sbr.rel (0) target = $region33
    $region32: #{tpu_custom_call.1} parent=1 // pred_region
      _
    $region33: #{tpu_custom_call.1} parent=1 // pred_fallthru
      _
    // Predicated region
    $region34: #{tpu_custom_call.1} parent=1 // pred_check
      _
    $region35: #{tpu_custom_call.1} parent=1 // pred_check_branch
      %89 = sbr.rel (0) target = $region37
    $region36: #{tpu_custom_call.1} parent=1 // pred_region
      %91 = dma.done [#allocation3], 128
    $region37: #{tpu_custom_call.1} parent=1 // pred_fallthru
      _
    // Predicated region
    $region38: #{tpu_custom_call.1} parent=1 // pred_check
      _
    $region39: #{tpu_custom_call.1} parent=1 // pred_check_branch
      %93 = sbr.rel (0) target = $region41
    $region40: #{tpu_custom_call.1} parent=1 // pred_region
      %95 = dma.done [#allocation6], 128
    $region41: #{tpu_custom_call.1} parent=1 // pred_fallthru
      _
    // Predicated region
    $region42: #{tpu_custom_call.1} parent=1 // pred_check
      _
    $region43: #{tpu_custom_call.1} parent=1 // pred_check_branch
      %97 = sbr.rel (0) target = $region45
    $region44: #{tpu_custom_call.1} parent=1 // pred_region
      %99 = dma.done [#allocation6], 2048
    $region45: #{tpu_custom_call.1} parent=1 // pred_fallthru
      _
    // Predicated region
    $region46: #{tpu_custom_call.1} parent=1 // pred_check
      _
    $region47: #{tpu_custom_call.1} parent=1 // pred_check_branch
      %101 = sbr.rel (0) target = $region49
    $region48: #{tpu_custom_call.1} parent=1 // pred_region
      %103 = dma.done [#allocation9], 1024
    $region49: #{tpu_custom_call.1} parent=1 // pred_fallthru
      _
    // Predicated region
    $region50: #{tpu_custom_call.1} parent=1 // pred_check
      _
    $region51: #{tpu_custom_call.1} parent=1 // pred_check_branch
      %105 = sbr.rel (0) target = $region53
    $region52: #{tpu_custom_call.1} parent=1 // pred_region
      %107 = dma.done [#allocation9], 1024
    $region53: #{tpu_custom_call.1} parent=1 // pred_fallthru
      _
    %v108 = vld [vmem:[#allocation2] sm:$0xf]
    %v109 = vld [vmem:[#allocation2 + $0x4] sm:$0xf]
    %v110 = vld [vmem:[#allocation5] sm:$0xf]
    %v111 = vld [vmem:[#allocation5 + $0x4] sm:$0xf]
    %v112 = vld [vmem:[#allocation7] sm:$0xff]
    %v113 = vld [vmem:[#allocation7 + $0x8] sm:$0xff]
    %v114 = vld [vmem:[#allocation7 + $0x10] sm:$0xff]
    %v115 = vld [vmem:[#allocation7 + $0x18] sm:$0xff]
    %v116 = vld [vmem:[#allocation7 + $0x20] sm:$0xff]
    %v117 = vld [vmem:[#allocation7 + $0x28] sm:$0xff]
    %v118 = vld [vmem:[#allocation7 + $0x30] sm:$0xff]
    %v119 = vld [vmem:[#allocation7 + $0x38] sm:$0xff]
    %v120 = vld [vmem:[#allocation7 + $0x40] sm:$0xff]
    %v121 = vld [vmem:[#allocation7 + $0x48] sm:$0xff]
    %v122 = vld [vmem:[#allocation7 + $0x50] sm:$0xff]
    %v123 = vld [vmem:[#allocation7 + $0x58] sm:$0xff]
    %v124 = vld [vmem:[#allocation7 + $0x60] sm:$0xff]
    %v125 = vld [vmem:[#allocation7 + $0x68] sm:$0xff]
    %v126 = vld [vmem:[#allocation7 + $0x70] sm:$0xff]
    %v127 = vld [vmem:[#allocation7 + $0x78] sm:$0xff]
    %v128 = vld [vmem:[%s3] sm:$0x3]
    %v130 = vperm.slane %v128, 0
    %v131 = vperm.slane %v128, 1
    %v136 = vunpack.c.l.b16 %v108
    %v137 = vunpack.c.l.b16 %v109
    %v138 = vpack.c.b16 %v137, %v136
    %v156 = vunpack.c.l.b16 %v112
    %v157 = vunpack.c.h.b16 %v112
    %v158 = vunpack.c.l.b16 %v113
    %v159 = vunpack.c.h.b16 %v113
    %v160 = vunpack.c.l.b16 %v114
    %v161 = vunpack.c.h.b16 %v114
    %v162 = vunpack.c.l.b16 %v115
    %v163 = vunpack.c.h.b16 %v115
    %v164 = vunpack.c.l.b16 %v116
    %v165 = vunpack.c.h.b16 %v116
    %v166 = vunpack.c.l.b16 %v117
    %v167 = vunpack.c.h.b16 %v117
    %v168 = vunpack.c.l.b16 %v118
    %v169 = vunpack.c.h.b16 %v118
    %v170 = vunpack.c.l.b16 %v119
    %v171 = vunpack.c.h.b16 %v119
    %v172 = vunpack.c.l.b16 %v120
    %v173 = vunpack.c.h.b16 %v120
    %v174 = vunpack.c.l.b16 %v121
    %v175 = vunpack.c.h.b16 %v121
    %v176 = vunpack.c.l.b16 %v122
    %v177 = vunpack.c.h.b16 %v122
    %v178 = vunpack.c.l.b16 %v123
    %v179 = vunpack.c.h.b16 %v123
    %v180 = vunpack.c.l.b16 %v124
    %v181 = vunpack.c.h.b16 %v124
    %v182 = vunpack.c.l.b16 %v125
    %v183 = vunpack.c.h.b16 %v125
    %v184 = vunpack.c.l.b16 %v126
    %v185 = vunpack.c.h.b16 %v126
    %v186 = vunpack.c.l.b16 %v127
    %v187 = vunpack.c.h.b16 %v127
    %v188 = vpack.c.b16 %v158, %v156
    %v189 = vpack.c.b16 %v159, %v157
    %v190 = vpack.c.b16 %v162, %v160
    %v191 = vpack.c.b16 %v163, %v161
    %v192 = vpack.c.b16 %v166, %v164
    %v193 = vpack.c.b16 %v167, %v165
    %v194 = vpack.c.b16 %v170, %v168
    %v195 = vpack.c.b16 %v171, %v169
    %v196 = vpack.c.b16 %v174, %v172
    %v197 = vpack.c.b16 %v175, %v173
    %v198 = vpack.c.b16 %v178, %v176
    %v199 = vpack.c.b16 %v179, %v177
    %v200 = vpack.c.b16 %v182, %v180
    %v201 = vpack.c.b16 %v183, %v181
    %v202 = vpack.c.b16 %v186, %v184
    %v203 = vpack.c.b16 %v187, %v185
    %220 = vmatpush.bf16.msra.mxu0 %v202
    %221 = vmatpush.bf16.msra.mxu0 %v200
    %222 = vmatpush.bf16.msra.mxu0 %v198
    %223 = vmatpush.bf16.msra.mxu0 %v196
    %224 = vmatpush.bf16.msra.mxu0 %v194
    %225 = vmatpush.bf16.msra.mxu0 %v192
    %226 = vmatpush.bf16.msra.mxu0 %v190
    %227 = vmatpush.bf16.msra.mxu0 %v188
    %228 = vmatmul.bf16.gmra.mxu0 %v138
    %v229 = vpop.f32.mrf.mxu0
    %v230 = vadd.f32 %v130, %v229
    %v231 = vpop.f32.mrf.mxu0
    %v232 = vadd.f32 %v130, %v231
    %233 = vdwg.mxu0
    %234 = vmatpush.bf16.msra.mxu0 %v203
    %235 = vmatpush.bf16.msra.mxu0 %v201
    %236 = vmatpush.bf16.msra.mxu0 %v199
    %237 = vmatpush.bf16.msra.mxu0 %v197
    %238 = vmatpush.bf16.msra.mxu0 %v195
    %239 = vmatpush.bf16.msra.mxu0 %v193
    %240 = vmatpush.bf16.msra.mxu0 %v191
    %241 = vmatpush.bf16.msra.mxu0 %v189
    %242 = vmatmul.bf16.gmra.mxu0 %v138
    %v243 = vpop.f32.mrf.mxu0
    %v244 = vadd.f32 %v131, %v243
    %v245 = vpop.f32.mrf.mxu0
    %v246 = vadd.f32 %v131, %v245
    %247 = vdwg.mxu0
    %v248 = vtanh.pop %v230
    %v249 = vtanh.pop %v232
    %v250 = vld [vmem:[#allocation8] sm:$0xf]
    %v251 = vld [vmem:[#allocation8 + $0x4] sm:$0xf]
    %v252 = vld [vmem:[#allocation8 + $0x8] sm:$0xf]
    %v253 = vld [vmem:[#allocation8 + $0xc] sm:$0xf]
    %v254 = vld [vmem:[#allocation8 + $0x10] sm:$0xf]
    %v255 = vld [vmem:[#allocation8 + $0x14] sm:$0xf]
    %v256 = vld [vmem:[#allocation8 + $0x18] sm:$0xf]
    %v257 = vld [vmem:[#allocation8 + $0x1c] sm:$0xf]
    %v258 = vld [vmem:[#allocation8 + $0x20] sm:$0xf]
    %v259 = vld [vmem:[#allocation8 + $0x24] sm:$0xf]
    %v260 = vld [vmem:[#allocation8 + $0x28] sm:$0xf]
    %v261 = vld [vmem:[#allocation8 + $0x2c] sm:$0xf]
    %v262 = vld [vmem:[#allocation8 + $0x30] sm:$0xf]
    %v263 = vld [vmem:[#allocation8 + $0x34] sm:$0xf]
    %v264 = vld [vmem:[#allocation8 + $0x38] sm:$0xf]
    %v265 = vld [vmem:[#allocation8 + $0x3c] sm:$0xf]
    %v266 = vld [vmem:[%s5] sm:$0x1]
    %v268 = vperm.slane %v266, 0
    %v272 = vunpack.c.l.b16 %v110
    %v273 = vunpack.c.l.b16 %v111
    %v274 = vpack.c.b16 %v273, %v272
    %v292 = vunpack.c.l.b16 %v250
    %v293 = vunpack.c.l.b16 %v251
    %v294 = vunpack.c.l.b16 %v252
    %v295 = vunpack.c.l.b16 %v253
    %v296 = vunpack.c.l.b16 %v254
    %v297 = vunpack.c.l.b16 %v255
    %v298 = vunpack.c.l.b16 %v256
    %v299 = vunpack.c.l.b16 %v257
    %v300 = vunpack.c.l.b16 %v258
    %v301 = vunpack.c.l.b16 %v259
    %v302 = vunpack.c.l.b16 %v260
    %v303 = vunpack.c.l.b16 %v261
    %v304 = vunpack.c.l.b16 %v262
    %v305 = vunpack.c.l.b16 %v263
    %v306 = vunpack.c.l.b16 %v264
    %v307 = vunpack.c.l.b16 %v265
    %v308 = vpack.c.b16 %v293, %v292
    %v309 = vpack.c.b16 %v295, %v294
    %v310 = vpack.c.b16 %v297, %v296
    %v311 = vpack.c.b16 %v299, %v298
    %v312 = vpack.c.b16 %v301, %v300
    %v313 = vpack.c.b16 %v303, %v302
    %v314 = vpack.c.b16 %v305, %v304
    %v315 = vpack.c.b16 %v307, %v306
    %324 = vmatpush.bf16.msra.mxu0 %v315
    %325 = vmatpush.bf16.msra.mxu0 %v314
    %326 = vmatpush.bf16.msra.mxu0 %v313
    %327 = vmatpush.bf16.msra.mxu0 %v312
    %328 = vmatpush.bf16.msra.mxu0 %v311
    %329 = vmatpush.bf16.msra.mxu0 %v310
    %330 = vmatpush.bf16.msra.mxu0 %v309
    %331 = vmatpush.bf16.msra.mxu0 %v308
    %332 = vmatmul.bf16.gmra.mxu0 %v274
    %v333 = vpop.f32.mrf.mxu0
    %v334 = vadd.f32 %v268, %v333
    %v335 = vpop.f32.mrf.mxu0
    %v336 = vadd.f32 %v268, %v335
    %337 = vdwg.mxu0
    %v338 = vtanh.pop %v334
    %v339 = vtanh.pop %v336
    %v340 = vpack.c.bf16 %v339, %v338
    %v341 = vld [vmem:[#allocation10] sm:$0xf]
    %v342 = vld [vmem:[#allocation10 + $0x4] sm:$0xf]
    %v343 = vld [vmem:[#allocation10 + $0x8] sm:$0xf]
    %v344 = vld [vmem:[#allocation10 + $0xc] sm:$0xf]
    %v345 = vld [vmem:[#allocation10 + $0x10] sm:$0xf]
    %v346 = vld [vmem:[#allocation10 + $0x14] sm:$0xf]
    %v347 = vld [vmem:[#allocation10 + $0x18] sm:$0xf]
    %v348 = vld [vmem:[#allocation10 + $0x1c] sm:$0xf]
    %v349 = vld [vmem:[#allocation10 + $0x20] sm:$0xf]
    %v350 = vld [vmem:[#allocation10 + $0x24] sm:$0xf]
    %v351 = vld [vmem:[#allocation10 + $0x28] sm:$0xf]
    %v352 = vld [vmem:[#allocation10 + $0x2c] sm:$0xf]
    %v353 = vld [vmem:[#allocation10 + $0x30] sm:$0xf]
    %v354 = vld [vmem:[#allocation10 + $0x34] sm:$0xf]
    %v355 = vld [vmem:[#allocation10 + $0x38] sm:$0xf]
    %v356 = vld [vmem:[#allocation10 + $0x3c] sm:$0xf]
    %v357 = vld [vmem:[%s7] sm:$0x1]
    %v359 = vperm.slane %v357, 0
    %v377 = vunpack.c.l.b16 %v341
    %v378 = vunpack.c.l.b16 %v342
    %v379 = vunpack.c.l.b16 %v343
    %v380 = vunpack.c.l.b16 %v344
    %v381 = vunpack.c.l.b16 %v345
    %v382 = vunpack.c.l.b16 %v346
    %v383 = vunpack.c.l.b16 %v347
    %v384 = vunpack.c.l.b16 %v348
    %v385 = vunpack.c.l.b16 %v349
    %v386 = vunpack.c.l.b16 %v350
    %v387 = vunpack.c.l.b16 %v351
    %v388 = vunpack.c.l.b16 %v352
    %v389 = vunpack.c.l.b16 %v353
    %v390 = vunpack.c.l.b16 %v354
    %v391 = vunpack.c.l.b16 %v355
    %v392 = vunpack.c.l.b16 %v356
    %v393 = vpack.c.b16 %v378, %v377
    %v394 = vpack.c.b16 %v380, %v379
    %v395 = vpack.c.b16 %v382, %v381
    %v396 = vpack.c.b16 %v384, %v383
    %v397 = vpack.c.b16 %v386, %v385
    %v398 = vpack.c.b16 %v388, %v387
    %v399 = vpack.c.b16 %v390, %v389
    %v400 = vpack.c.b16 %v392, %v391
    %409 = vmatpush.bf16.msra.mxu0 %v400
    %410 = vmatpush.bf16.msra.mxu0 %v399
    %411 = vmatpush.bf16.msra.mxu0 %v398
    %412 = vmatpush.bf16.msra.mxu0 %v397
    %413 = vmatpush.bf16.msra.mxu0 %v396
    %414 = vmatpush.bf16.msra.mxu0 %v395
    %415 = vmatpush.bf16.msra.mxu0 %v394
    %416 = vmatpush.bf16.msra.mxu0 %v393
    %417 = vmatmul.bf16.gmra.mxu0 %v340
    %v418 = vpop.f32.mrf.mxu0
    %v419 = vadd.f32 %v359, %v418
    %v420 = vpop.f32.mrf.mxu0
    %v421 = vadd.f32 %v359, %v420
    %422 = vdwg.mxu0
    %v423 = vtanh.pop %v419
    %v424 = vtanh.pop %v421
    %v425 = vmul.f32 %v423, %v248
    %v426 = vmul.f32 %v424, %v249
    %v427 = vadd.f32 %v425, %v244
    %v428 = vadd.f32 %v426, %v246
    %429 = vst [vmem:[#allocation11] sm:$0xff] %v427
    %430 = vst [vmem:[#allocation11 + $0x8] sm:$0xff] %v428
    // Predicated region
    $region54: #{tpu_custom_call.1} parent=1 // pred_check
      _
    $region55: #{tpu_custom_call.1} parent=1 // pred_check_branch
      %432 = sbr.rel (0) target = $region57
    $region56: #{tpu_custom_call.1} parent=1 // pred_region
      %434 = vsyncadd [#allocation4], 0
      %s435 = sshll.u32 [#allocation11], 4
      %s436 = int_to_ptr.vmem [resolvable:$true] %s435
      %s437 = sshll.u32 %s8, 4
      %s438 = int_to_ptr.hbm [resolvable:$true] %s437
      %443 = dma.vmem_to_hbm [thread:$0]  %s436, 256, %s438, [#allocation4], 128, 128, 8
    $region57: #{tpu_custom_call.1} parent=1 // pred_fallthru
      _
    // Predicated region
    $region58: #{tpu_custom_call.1} parent=1 // pred_check
      _
    $region59: #{tpu_custom_call.1} parent=1 // pred_check_branch
      %445 = sbr.rel (0) target = $region61
    $region60: #{tpu_custom_call.1} parent=1 // pred_region
      %447 = dma.done [#allocation4], 256
    $region61: #{tpu_custom_call.1} parent=1 // pred_fallthru
      _
    %448 = vsyncpa [#allocation3], 1
    %449 = vsyncpa [#allocation6], 1
    %450 = vsyncpa [#allocation9], 1
    %451 = vsyncpa [#allocation4], 1

</llo_original>
